<compile_context>
chip_gen: v5e
topology: v5e:2x2
jax: 0.10.0
libtpu: 0.0.40
codegen_flags: <defaults>
</compile_context>

<pallas_src>
import jax
import jax.numpy as jnp
from jax import lax
from jax.experimental import pallas as pl
from jax.experimental.pallas import tpu as pltpu


def _bce_dice_stats_kernel(x_ref, t_ref, out_ref):
    # x_ref / t_ref blocks are (1, C, T); squeeze the leading batch dim.
    x = x_ref[0].astype(jnp.float32)   # (C, T)
    t = t_ref[0].astype(jnp.float32)   # (C, T)

    # One transcendental exp per element, shared by BCE and the sigmoid.
    e = jnp.exp(-jnp.abs(x))

    # Numerically stable binary_cross_entropy_with_logits, summed over the
    # block (mean over N*C*H*W is taken in the JAX glue).
    bce_sum = jnp.sum(jnp.maximum(x, 0.0) - x * t + jnp.log1p(e))

    # Dice only needs channels 1 and 2; compute the sigmoid only there,
    # reusing e:  sigmoid(x) = where(x >= 0, 1, e) / (1 + e).
    x12 = x[1:3]                       # (2, T)
    e12 = e[1:3]
    t12 = t[1:3]
    s12 = jnp.where(x12 >= 0.0, 1.0, e12) / (1.0 + e12)
    p12 = s12 * t12

    int1 = jnp.sum(p12[0:1])
    int2 = jnp.sum(p12[1:2])
    sum_s1 = jnp.sum(s12[0:1])
    sum_s2 = jnp.sum(s12[1:2])
    sum_t1 = jnp.sum(t12[0:1])
    sum_t2 = jnp.sum(t12[1:2])

    # Pack the 7 per-tile statistics into sublanes of a single (8, 128) tile.
    sub = lax.broadcasted_iota(jnp.int32, (8, 128), 0)
    packed = jnp.zeros((8, 128), jnp.float32)
    for k, v in enumerate((bce_sum, int1, sum_s1, sum_t1, int2, sum_s2, sum_t2)):
        packed = jnp.where(sub == k, v, packed)
    out_ref[0, 0] = packed


def _pick_spatial_tile(hw, max_lanes=16384):
    """Largest lane-aligned tile (multiple of 128) that divides hw, capped."""
    if hw <= max_lanes:
        return hw
    t = (max_lanes // 128) * 128
    while t >= 128:
        if hw % t == 0:
            return t
        t -= 128
    # TODO(synk): no 128-aligned divisor of hw; fall back to one big tile.
    return hw


def bce_dice_loss_lits2017(logits, target):
    """Equivalent of BCEDiceLoss_lits2017.forward(input, target)."""
    N, C, H, W = logits.shape
    assert C >= 3, "dice terms index channels 1 and 2"
    HW = H * W

    T = _pick_spatial_tile(HW)
    n_tiles = HW // T

    # Lane-dense layout: spatial dims flattened into the last axis.
    x = logits.reshape(N, C, HW)
    t = target.reshape(N, C, HW)

    stats = pl.pallas_call(
        _bce_dice_stats_kernel,
        out_shape=jax.ShapeDtypeStruct((N, n_tiles, 8, 128), jnp.float32),
        grid_spec=pltpu.PrefetchScalarGridSpec(
            num_scalar_prefetch=0,
            grid=(N, n_tiles),
            in_specs=[
                pl.BlockSpec((1, C, T), lambda b, s: (b, 0, s)),
                pl.BlockSpec((1, C, T), lambda b, s: (b, 0, s)),
            ],
            out_specs=pl.BlockSpec((1, 1, 8, 128), lambda b, s: (b, s, 0, 0)),
        ),
        compiler_params=pltpu.CompilerParams(
            dimension_semantics=("parallel", "parallel"),
            vmem_limit_bytes=32 * 1024 * 1024,
        ),
    )(x, t)

    # (N, n_tiles, 8) lane-0 stats -> reduce over spatial tiles -> (N, 8).
    st = jnp.sum(stats[:, :, :, 0], axis=1)

    smooth = 1e-05
    # l2_reg = 0.9989 in the PyTorch module is unused in its forward pass.
    bce = jnp.sum(st[:, 0]) / jnp.float32(N * C * HW)

    dice_1 = (2.0 * st[:, 1] + smooth) / (st[:, 2] + st[:, 3] + smooth)
    dice_2 = (2.0 * st[:, 4] + smooth) / (st[:, 5] + st[:, 6] + smooth)
    dice_1 = 1.0 - jnp.sum(dice_1) / N
    dice_2 = 1.0 - jnp.sum(dice_2) / N
    mean_dice = (dice_1 + dice_2) / 2.0
    return bce + mean_dice


def _reference_loss(logits, target):
    """Pure-JAX reference mirroring the PyTorch forward, for validation."""
    bce = jnp.mean(jnp.maximum(logits, 0.0) - logits * target
                   + jnp.log1p(jnp.exp(-jnp.abs(logits))))
    smooth = 1e-05
    s = jax.nn.sigmoid(logits)
    num = logits.shape[0]
    i1 = s[:, 1].reshape(num, -1)
    i2 = s[:, 2].reshape(num, -1)
    t1 = target[:, 1].reshape(num, -1)
    t2 = target[:, 2].reshape(num, -1)
    d1 = (2.0 * jnp.sum(i1 * t1, 1) + smooth) / (jnp.sum(i1, 1) + jnp.sum(t1, 1) + smooth)
    d2 = (2.0 * jnp.sum(i2 * t2, 1) + smooth) / (jnp.sum(i2, 1) + jnp.sum(t2, 1) + smooth)
    d1 = 1.0 - jnp.sum(d1) / num
    d2 = 1.0 - jnp.sum(d2) / num
    return bce + (d1 + d2) / 2.0


if __name__ == "__main__":
    key = jax.random.PRNGKey(0)
    k1, k2 = jax.random.split(key)

    N, C, H, W = 2, 4, 16, 16
    logits = jax.random.normal(k1, (N, C, H, W), dtype=jnp.float32)
    target = jax.random.uniform(k2, (N, C, H, W), dtype=jnp.float32)

    loss = jax.jit(bce_dice_loss_lits2017)(logits, target)
    loss = jax.block_until_ready(loss)

    ref = _reference_loss(logits, target)
    assert jnp.allclose(loss, ref, rtol=1e-5, atol=1e-5), (loss, ref)

    print("KERNEL_OK")
</pallas_src>

<mosaic_0001>
module attributes {stable_mosaic.version = 11 : i64} {
  func.func @_bce_dice_stats_kernel(%arg0: i32, %arg1: i32, %arg2: memref<1x4x256xf32, #tpu.memory_space<vmem>>, %arg3: memref<1x4x256xf32, #tpu.memory_space<vmem>>, %arg4: memref<1x1x8x128xf32, #tpu.memory_space<vmem>>) attributes {dimension_semantics = [#tpu.dimension_semantics<parallel>, #tpu.dimension_semantics<parallel>], iteration_bounds = array<i64: 2, 1>, scalar_prefetch = 0 : i64, scratch_operands = 0 : i64, tpu.core_type = #tpu.core_type<tc>, window_params = [{transform_indices = @transform_0, window_bounds = array<i64: 1, 4, 256>}, {transform_indices = @transform_1, window_bounds = array<i64: 1, 4, 256>}, {transform_indices = @transform_2, window_bounds = array<i64: 1, 1, 8, 128>}]} {
    %c0 = arith.constant 0 : index
    %c0_0 = arith.constant 0 : index
    %c0_1 = arith.constant 0 : index
    %0 = vector.load %arg2[%c0, %c0_0, %c0_1] : memref<1x4x256xf32, #tpu.memory_space<vmem>>, vector<1x4x256xf32>
    %1 = vector.shape_cast %0 : vector<1x4x256xf32> to vector<4x256xf32>
    %c0_2 = arith.constant 0 : index
    %c0_3 = arith.constant 0 : index
    %c0_4 = arith.constant 0 : index
    %2 = vector.load %arg3[%c0_2, %c0_3, %c0_4] : memref<1x4x256xf32, #tpu.memory_space<vmem>>, vector<1x4x256xf32>
    %3 = vector.shape_cast %2 : vector<1x4x256xf32> to vector<4x256xf32>
    %4 = math.absf %1 : vector<4x256xf32>
    %cst = arith.constant 0.000000e+00 : f32
    %5 = vector.broadcast %cst : f32 to vector<4x256xf32>
    %6 = arith.subf %5, %4 : vector<4x256xf32>
    %7 = math.exp %6 : vector<4x256xf32>
    %cst_5 = arith.constant 0.000000e+00 : f32
    %8 = vector.broadcast %cst_5 : f32 to vector<4x256xf32>
    %9 = arith.maximumf %1, %8 : vector<4x256xf32>
    %10 = arith.mulf %1, %3 : vector<4x256xf32>
    %11 = arith.subf %9, %10 : vector<4x256xf32>
    %12 = math.log1p %7 : vector<4x256xf32>
    %13 = arith.addf %11, %12 : vector<4x256xf32>
    %14 = vector.shape_cast %13 : vector<4x256xf32> to vector<1x4x256xf32>
    %cst_6 = arith.constant dense<0.000000e+00> : vector<1xf32>
    %15 = vector.multi_reduction <add>, %14, %cst_6 [1, 2] : vector<1x4x256xf32> to vector<1xf32>
    %16 = vector.shape_cast %15 : vector<1xf32> to vector<1x1x1xf32>
    %17 = vector.extract %16[0, 0, 0] : f32 from vector<1x1x1xf32>
    %18 = vector.extract_strided_slice %1 {offsets = [1, 0], sizes = [2, 256], strides = [1, 1]} : vector<4x256xf32> to vector<2x256xf32>
    %19 = vector.extract_strided_slice %7 {offsets = [1, 0], sizes = [2, 256], strides = [1, 1]} : vector<4x256xf32> to vector<2x256xf32>
    %20 = vector.extract_strided_slice %3 {offsets = [1, 0], sizes = [2, 256], strides = [1, 1]} : vector<4x256xf32> to vector<2x256xf32>
    %cst_7 = arith.constant 0.000000e+00 : f32
    %21 = vector.broadcast %cst_7 : f32 to vector<2x256xf32>
    %22 = arith.cmpf oge, %18, %21 : vector<2x256xf32>
    %cst_8 = arith.constant 1.000000e+00 : f32
    %23 = vector.broadcast %cst_8 : f32 to vector<2x256xf32>
    %24 = arith.select %22, %23, %19 : vector<2x256xi1>, vector<2x256xf32>
    %cst_9 = arith.constant 1.000000e+00 : f32
    %25 = vector.broadcast %cst_9 : f32 to vector<2x256xf32>
    %26 = arith.addf %25, %19 : vector<2x256xf32>
    %27 = arith.divf %24, %26 : vector<2x256xf32>
    %28 = arith.mulf %27, %20 : vector<2x256xf32>
    %29 = vector.extract_strided_slice %28 {offsets = [0, 0], sizes = [1, 256], strides = [1, 1]} : vector<2x256xf32> to vector<1x256xf32>
    %30 = vector.shape_cast %29 : vector<1x256xf32> to vector<1x1x256xf32>
    %cst_10 = arith.constant dense<0.000000e+00> : vector<1xf32>
    %31 = vector.multi_reduction <add>, %30, %cst_10 [1, 2] : vector<1x1x256xf32> to vector<1xf32>
    %32 = vector.shape_cast %31 : vector<1xf32> to vector<1x1x1xf32>
    %33 = vector.extract %32[0, 0, 0] : f32 from vector<1x1x1xf32>
    %34 = vector.extract_strided_slice %28 {offsets = [1, 0], sizes = [1, 256], strides = [1, 1]} : vector<2x256xf32> to vector<1x256xf32>
    %35 = vector.shape_cast %34 : vector<1x256xf32> to vector<1x1x256xf32>
    %cst_11 = arith.constant dense<0.000000e+00> : vector<1xf32>
    %36 = vector.multi_reduction <add>, %35, %cst_11 [1, 2] : vector<1x1x256xf32> to vector<1xf32>
    %37 = vector.shape_cast %36 : vector<1xf32> to vector<1x1x1xf32>
    %38 = vector.extract %37[0, 0, 0] : f32 from vector<1x1x1xf32>
    %39 = vector.extract_strided_slice %27 {offsets = [0, 0], sizes = [1, 256], strides = [1, 1]} : vector<2x256xf32> to vector<1x256xf32>
    %40 = vector.shape_cast %39 : vector<1x256xf32> to vector<1x1x256xf32>
    %cst_12 = arith.constant dense<0.000000e+00> : vector<1xf32>
    %41 = vector.multi_reduction <add>, %40, %cst_12 [1, 2] : vector<1x1x256xf32> to vector<1xf32>
    %42 = vector.shape_cast %41 : vector<1xf32> to vector<1x1x1xf32>
    %43 = vector.extract %42[0, 0, 0] : f32 from vector<1x1x1xf32>
    %44 = vector.extract_strided_slice %27 {offsets = [1, 0], sizes = [1, 256], strides = [1, 1]} : vector<2x256xf32> to vector<1x256xf32>
    %45 = vector.shape_cast %44 : vector<1x256xf32> to vector<1x1x256xf32>
    %cst_13 = arith.constant dense<0.000000e+00> : vector<1xf32>
    %46 = vector.multi_reduction <add>, %45, %cst_13 [1, 2] : vector<1x1x256xf32> to vector<1xf32>
    %47 = vector.shape_cast %46 : vector<1xf32> to vector<1x1x1xf32>
    %48 = vector.extract %47[0, 0, 0] : f32 from vector<1x1x1xf32>
    %49 = vector.extract_strided_slice %20 {offsets = [0, 0], sizes = [1, 256], strides = [1, 1]} : vector<2x256xf32> to vector<1x256xf32>
    %50 = vector.shape_cast %49 : vector<1x256xf32> to vector<1x1x256xf32>
    %cst_14 = arith.constant dense<0.000000e+00> : vector<1xf32>
    %51 = vector.multi_reduction <add>, %50, %cst_14 [1, 2] : vector<1x1x256xf32> to vector<1xf32>
    %52 = vector.shape_cast %51 : vector<1xf32> to vector<1x1x1xf32>
    %53 = vector.extract %52[0, 0, 0] : f32 from vector<1x1x1xf32>
    %54 = vector.extract_strided_slice %20 {offsets = [1, 0], sizes = [1, 256], strides = [1, 1]} : vector<2x256xf32> to vector<1x256xf32>
    %55 = vector.shape_cast %54 : vector<1x256xf32> to vector<1x1x256xf32>
    %cst_15 = arith.constant dense<0.000000e+00> : vector<1xf32>
    %56 = vector.multi_reduction <add>, %55, %cst_15 [1, 2] : vector<1x1x256xf32> to vector<1xf32>
    %57 = vector.shape_cast %56 : vector<1xf32> to vector<1x1x1xf32>
    %58 = vector.extract %57[0, 0, 0] : f32 from vector<1x1x1xf32>
    %59 = tpu.iota {dimensions = array<i32: 0>} : vector<8x128xi32>
    %cst_16 = arith.constant 0.000000e+00 : f32
    %60 = vector.broadcast %cst_16 : f32 to vector<8x128xf32>
    %c0_i32 = arith.constant 0 : i32
    %61 = vector.broadcast %c0_i32 : i32 to vector<8x128xi32>
    %62 = arith.cmpi eq, %59, %61 : vector<8x128xi32>
    %63 = vector.broadcast %17 : f32 to vector<8x128xf32>
    %64 = arith.select %62, %63, %60 : vector<8x128xi1>, vector<8x128xf32>
    %c1_i32 = arith.constant 1 : i32
    %65 = vector.broadcast %c1_i32 : i32 to vector<8x128xi32>
    %66 = arith.cmpi eq, %59, %65 : vector<8x128xi32>
    %67 = vector.broadcast %33 : f32 to vector<8x128xf32>
    %68 = arith.select %66, %67, %64 : vector<8x128xi1>, vector<8x128xf32>
    %c2_i32 = arith.constant 2 : i32
    %69 = vector.broadcast %c2_i32 : i32 to vector<8x128xi32>
    %70 = arith.cmpi eq, %59, %69 : vector<8x128xi32>
    %71 = vector.broadcast %43 : f32 to vector<8x128xf32>
    %72 = arith.select %70, %71, %68 : vector<8x128xi1>, vector<8x128xf32>
    %c3_i32 = arith.constant 3 : i32
    %73 = vector.broadcast %c3_i32 : i32 to vector<8x128xi32>
    %74 = arith.cmpi eq, %59, %73 : vector<8x128xi32>
    %75 = vector.broadcast %53 : f32 to vector<8x128xf32>
    %76 = arith.select %74, %75, %72 : vector<8x128xi1>, vector<8x128xf32>
    %c4_i32 = arith.constant 4 : i32
    %77 = vector.broadcast %c4_i32 : i32 to vector<8x128xi32>
    %78 = arith.cmpi eq, %59, %77 : vector<8x128xi32>
    %79 = vector.broadcast %38 : f32 to vector<8x128xf32>
    %80 = arith.select %78, %79, %76 : vector<8x128xi1>, vector<8x128xf32>
    %c5_i32 = arith.constant 5 : i32
    %81 = vector.broadcast %c5_i32 : i32 to vector<8x128xi32>
    %82 = arith.cmpi eq, %59, %81 : vector<8x128xi32>
    %83 = vector.broadcast %48 : f32 to vector<8x128xf32>
    %84 = arith.select %82, %83, %80 : vector<8x128xi1>, vector<8x128xf32>
    %c6_i32 = arith.constant 6 : i32
    %85 = vector.broadcast %c6_i32 : i32 to vector<8x128xi32>
    %86 = arith.cmpi eq, %59, %85 : vector<8x128xi32>
    %87 = vector.broadcast %58 : f32 to vector<8x128xf32>
    %88 = arith.select %86, %87, %84 : vector<8x128xi1>, vector<8x128xf32>
    %c0_17 = arith.constant 0 : index
    %c0_18 = arith.constant 0 : index
    %c0_19 = arith.constant 0 : index
    %c0_20 = arith.constant 0 : index
    %89 = vector.load %arg4[%c0_17, %c0_18, %c0_19, %c0_20] : memref<1x1x8x128xf32, #tpu.memory_space<vmem>>, vector<1x1x8x128xf32>
    %90 = vector.shape_cast %89 : vector<1x1x8x128xf32> to vector<8x128xf32>
    %91 = vector.shape_cast %88 : vector<8x128xf32> to vector<1x1x8x128xf32>
    tpu.vector_store %arg4[%c0_17, %c0_18, %c0_19, %c0_20], %91 {strides = array<i32>} : memref<1x1x8x128xf32, #tpu.memory_space<vmem>>, vector<1x1x8x128xf32>,
    return
  }
  func.func @transform_0(%arg0: i32, %arg1: i32) -> (i32, i32, i32) {
    %c0_i32 = arith.constant 0 : i32
    %c0_i32_0 = arith.constant 0 : i32
    return %arg0, %c0_i32, %arg1 : i32, i32, i32
  }
  func.func @transform_1(%arg0: i32, %arg1: i32) -> (i32, i32, i32) {
    %c0_i32 = arith.constant 0 : i32
    %c0_i32_0 = arith.constant 0 : i32
    return %arg0, %c0_i32, %arg1 : i32, i32, i32
  }
  func.func @transform_2(%arg0: i32, %arg1: i32) -> (i32, i32, i32, i32) {
    %c0_i32 = arith.constant 0 : i32
    %c0_i32_0 = arith.constant 0 : i32
    %c0_i32_1 = arith.constant 0 : i32
    return %arg0, %arg1, %c0_i32, %c0_i32_0 : i32, i32, i32, i32
  }
}

</mosaic_0001>

<llo_original>
// kernel: bce_dice_loss_lits2017.1
$region0: #{bce_dice_loss_lits2017.1}
  #allocation0 [shape = 'u32[]', space=smem, size = 0x4, offset = 0x4, fixed_abs, tag = 'smem constant byte address 0x4 - core index']
  #allocation1 [shape = 'u32[72,128]{1,0:T(1,128)}', space=vmem, size = 0x9000, scoped, tag = 'internal scratch']
  %s0 = inlined_call_operand.vmem [shape: f32[2,4,256], index: 0, kind: input, shape index: {}]
  %s1 = inlined_call_operand.vmem [shape: f32[2,4,256], index: 1, kind: input, shape index: {}]
  %s2 = inlined_call_operand.vmem [shape: f32[2,1,8,128], index: 2, kind: output, shape index: {}]
  %s3 = sld [smem:[#allocation0]]
  $region41: #{bce_dice_loss_lits2017.1} parent=0
    _
  %s5 = ssub.s32 1, %s3
  %s6 = scalar_select 0, %s5, %s3
  loop: start=0, step=1, limit=4
  $region2: #{bce_dice_loss_lits2017.1} parent=0 // loop_pre_header
    _
  $region3: #{bce_dice_loss_lits2017.1} parent=0 // loop_header
    %s8 = sphi 0, %s12
    %p9 = scmp.ge.s32.totalorder %s8, 4
    %s15 = sphi 0, %s27
    %s16 = sphi 0, %s23
    %s17 = sphi 0, %s15
    %s18 = sphi 0, %s16
    %s19 = sphi 0, %s17
    %s20 = sphi 0, %s18
    %s32 = sphi 0, %s34
    %s35 = sphi 0, %s32
    %s36 = sphi 0, %s35
    %s52 = sphi 0, %s36
    %s60 = sphi 0, %s62
    %s63 = sphi 0, %s60
    %s64 = sphi 0, %s63
    %s80 = sphi 0, %s64
    %s88 = sphi 0, %s90
    %s91 = sphi 0, %s88
    %s92 = sphi 0, %s91
    %s108 = sphi 0, %s92
  $region4: #{bce_dice_loss_lits2017.1} parent=0 // loop_header_branch
    %11 = sbr.rel (%p9) target = $region8
  $region5: #{bce_dice_loss_lits2017.1} parent=0 // loop_body
    %s13 = ssub.s32 %s8, 1
    %s14 = ssub.s32 %s8, 2
    %s21 = sadd.s32 1, %s16
    %p22 = scmp.ge.s32.totalorder %s21, 1
    %s23 = scalar_select %p22, 0, %s21
    %s24 = sadd.s32 1, %s15
    %s25 = scalar_select %p22, %s24, %s15
    %p26 = scmp.ge.s32.totalorder %s25, 2
    %s27 = scalar_select %p26, 0, %s25
    %s28 = ssub.s32 %s15, %s27
    %s29 = ssub.s32 %s16, %s23
    %s30 = sor.u32 %s28, %s29
    %p31 = scmp.eq.s32.totalorder %s30, 0
    %s33 = sadd.s32 %s32, 1
    %s34 = scalar_select %p31, %s32, %s33
    %p37 = pneg %p31
    %p38 = scmp.eq.s32.totalorder %s8, 1
    %p39 = por %p37, %p38
    %p40 = scmp.ne.s32.totalorder %s32, %s35
    %p41 = scmp.eq.s32.totalorder %s8, 0
    %p42 = por %p40, %p41
    %p43 = scmp.ne.s32.totalorder %s32, %s35
    %p44 = scmp.eq.s32.totalorder %s13, 1
    %p45 = por %p43, %p44
    %p46 = scmp.ne.s32.totalorder %s35, %s36
    %p47 = scmp.eq.s32.totalorder %s13, 0
    %p48 = por %p46, %p47
    %p49 = scmp.ne.s32.totalorder %s35, %s36
    %p50 = scmp.eq.s32.totalorder %s14, 1
    %p51 = por %p49, %p50
    %p53 = scmp.ne.s32.totalorder %s36, %s52
    %p54 = scmp.eq.s32.totalorder %s14, 0
    %p55 = por %p53, %p54
    %s56 = ssub.s32 %s15, %s27
    %s57 = ssub.s32 %s16, %s23
    %s58 = sor.u32 %s56, %s57
    %p59 = scmp.eq.s32.totalorder %s58, 0
    %s61 = sadd.s32 %s60, 1
    %s62 = scalar_select %p59, %s60, %s61
    %p65 = pneg %p59
    %p66 = scmp.eq.s32.totalorder %s8, 1
    %p67 = por %p65, %p66
    %p68 = scmp.ne.s32.totalorder %s60, %s63
    %p69 = scmp.eq.s32.totalorder %s8, 0
    %p70 = por %p68, %p69
    %p71 = scmp.ne.s32.totalorder %s60, %s63
    %p72 = scmp.eq.s32.totalorder %s13, 1
    %p73 = por %p71, %p72
    %p74 = scmp.ne.s32.totalorder %s63, %s64
    %p75 = scmp.eq.s32.totalorder %s13, 0
    %p76 = por %p74, %p75
    %p77 = scmp.ne.s32.totalorder %s63, %s64
    %p78 = scmp.eq.s32.totalorder %s14, 1
    %p79 = por %p77, %p78
    %p81 = scmp.ne.s32.totalorder %s64, %s80
    %p82 = scmp.eq.s32.totalorder %s14, 0
    %p83 = por %p81, %p82
    %s84 = ssub.s32 %s15, %s27
    %s85 = ssub.s32 %s16, %s23
    %s86 = sor.u32 %s84, %s85
    %p87 = scmp.eq.s32.totalorder %s86, 0
    %s89 = sadd.s32 %s88, 1
    %s90 = scalar_select %p87, %s88, %s89
    %p93 = pneg %p87
    %p94 = scmp.eq.s32.totalorder %s8, 1
    %p95 = por %p93, %p94
    %p96 = scmp.ne.s32.totalorder %s88, %s91
    %p97 = scmp.eq.s32.totalorder %s8, 0
    %p98 = por %p96, %p97
    %p99 = scmp.ne.s32.totalorder %s88, %s91
    %p100 = scmp.eq.s32.totalorder %s13, 1
    %p101 = por %p99, %p100
    %p102 = scmp.ne.s32.totalorder %s91, %s92
    %p103 = scmp.eq.s32.totalorder %s13, 0
    %p104 = por %p102, %p103
    %p105 = scmp.ne.s32.totalorder %s91, %s92
    %p106 = scmp.eq.s32.totalorder %s14, 1
    %p107 = por %p105, %p106
    %p109 = scmp.ne.s32.totalorder %s92, %s108
    %p110 = scmp.eq.s32.totalorder %s14, 0
    %p111 = por %p109, %p110
    %p112 = scmp.le.s32.totalorder 1, %s8
    %p113 = scmp.lt.s32.totalorder %s8, 3
    %p114 = pnand %p112, %p113
    %p115 = pneg %p114
    // Predicated region
    $region9: #{bce_dice_loss_lits2017.1} parent=5 // pred_check
      _
    $region10: #{bce_dice_loss_lits2017.1} parent=5 // pred_check_branch
      %117 = sbr.rel (%p114) target = $region12
    $region11: #{bce_dice_loss_lits2017.1} parent=5 // pred_region
      %s118 = ssub.s32 %s8, 1
    $region12: #{bce_dice_loss_lits2017.1} parent=5 // pred_fallthru
      _
    %p119 = scmp.lt.s32.totalorder %s8, 2
    // Predicated region
    $region13: #{bce_dice_loss_lits2017.1} parent=5 // pred_check
      %p120 = pneg %p119
    $region14: #{bce_dice_loss_lits2017.1} parent=5 // pred_check_branch
      %122 = sbr.rel (%p120) target = $region16
    $region15: #{bce_dice_loss_lits2017.1} parent=5 // pred_region
      // Predicated region
      $region17: #{bce_dice_loss_lits2017.1} parent=15 // pred_check
        %p123 = pneg %p42
      $region18: #{bce_dice_loss_lits2017.1} parent=15 // pred_check_branch
        %125 = sbr.rel (%p123) target = $region20
      $region19: #{bce_dice_loss_lits2017.1} parent=15 // pred_region
        %s126 = smul.u32 2, %s16
        %p127 = scmp.lt.s32.totalorder %s15, 1
        %s128 = scalar_select %p127, %s15, 1
        %p129 = scmp.lt.s32.totalorder %s126, 1
        %s130 = scalar_select %p129, %s126, 1
        %s131 = smul.addr %s128, 2
        %s132 = sadd.s32 %s130, %s131
        %s133 = smul.addr %s132, 4
        %s134 = scalar_lea.vmem %s0, %s133
        %s135 = smul.u32 2, %s16
      $region20: #{bce_dice_loss_lits2017.1} parent=15 // pred_fallthru
        _
      // Predicated region
      $region21: #{bce_dice_loss_lits2017.1} parent=15 // pred_check
        %p136 = pneg %p70
      $region22: #{bce_dice_loss_lits2017.1} parent=15 // pred_check_branch
        %138 = sbr.rel (%p136) target = $region24
      $region23: #{bce_dice_loss_lits2017.1} parent=15 // pred_region
        %s139 = smul.u32 2, %s16
        %p140 = scmp.lt.s32.totalorder %s15, 1
        %s141 = scalar_select %p140, %s15, 1
        %p142 = scmp.lt.s32.totalorder %s139, 1
        %s143 = scalar_select %p142, %s139, 1
        %s144 = smul.addr %s141, 2
        %s145 = sadd.s32 %s143, %s144
        %s146 = smul.addr %s145, 4
        %s147 = scalar_lea.vmem %s1, %s146
        %s148 = smul.u32 2, %s16
      $region24: #{bce_dice_loss_lits2017.1} parent=15 // pred_fallthru
        _
    $region16: #{bce_dice_loss_lits2017.1} parent=5 // pred_fallthru
      _
    %p149 = scmp.le.s32.totalorder 1, %s8
    %p150 = scmp.lt.s32.totalorder %s8, 3
    %p151 = pnand %p149, %p150
    %p152 = pneg %p151
    // Predicated region
    $region25: #{bce_dice_loss_lits2017.1} parent=5 // pred_check
      _
    $region26: #{bce_dice_loss_lits2017.1} parent=5 // pred_check_branch
      %154 = sbr.rel (%p151) target = $region28
    $region27: #{bce_dice_loss_lits2017.1} parent=5 // pred_region
      %s155 = ssub.s32 %s8, 1
      %s156 = smul.u32 2, %s18
      %p157 = scmp.lt.s32.totalorder %s17, 1
      %s158 = scalar_select %p157, %s17, 1
      %p159 = scmp.lt.s32.totalorder %s156, 1
      %s160 = scalar_select %p159, %s156, 1
      %s161 = smul.addr %s158, 2
      %s162 = sadd.s32 %s160, %s161
      %s163 = smul.addr %s162, 4
      %s164 = scalar_lea.vmem %s0, %s163
      %p165 = pneg %p48
      %p166 = pneg %p45
      %s167 = smul.u32 2, %s18
      %p168 = scmp.lt.s32.totalorder %s17, 1
      %s169 = scalar_select %p168, %s17, 1
      %p170 = scmp.lt.s32.totalorder %s167, 1
      %s171 = scalar_select %p170, %s167, 1
      %s172 = smul.addr %s169, 2
      %s173 = sadd.s32 %s171, %s172
      %s174 = smul.addr %s173, 4
      %s175 = scalar_lea.vmem %s1, %s174
      %p176 = pneg %p76
      %p177 = pneg %p73
      %p178 = pneg %p104
      %p179 = pneg %p101
      %p180 = scmp.lt.s32.totalorder %s17, 1
      %s181 = scalar_select %p180, %s17, 1
      %p182 = scmp.lt.s32.totalorder %s18, 0
      %s183 = scalar_select %p182, %s18, 0
      %s184 = sadd.s32 %s183, %s181
      %s185 = smul.addr %s184, 8
      %s186 = scalar_lea.vmem %s2, %s185
      %s187 = smul.u32 2, %s18
      %p188 = scmp.lt.s32.totalorder %s17, 1
      %s189 = scalar_select %p188, %s17, 1
      %p190 = scmp.lt.s32.totalorder %s187, 1
      %s191 = scalar_select %p190, %s187, 1
      %s192 = smul.addr %s189, 2
      %s193 = sadd.s32 %s191, %s192
      %s194 = smul.addr %s193, 4
      %s195 = scalar_lea.vmem %s0, %s194
      %s196 = smul.u32 2, %s18
      %s197 = smul.u32 2, %s18
      %p198 = scmp.lt.s32.totalorder %s17, 1
      %s199 = scalar_select %p198, %s17, 1
      %p200 = scmp.lt.s32.totalorder %s197, 1
      %s201 = scalar_select %p200, %s197, 1
      %s202 = smul.addr %s199, 2
      %s203 = sadd.s32 %s201, %s202
      %s204 = smul.addr %s203, 4
      %s205 = scalar_lea.vmem %s1, %s204
      %s206 = smul.u32 2, %s18
      %p207 = scmp.lt.s32.totalorder %s17, 1
      %s208 = scalar_select %p207, %s17, 1
      %p209 = scmp.lt.s32.totalorder %s18, 0
      %s210 = scalar_select %p209, %s18, 0
      %s211 = sadd.s32 %s210, %s208
      %s212 = smul.addr %s211, 8
      %s213 = scalar_lea.vmem %s2, %s212
      %v214 = vld [vmem:[%s195] sm:$0xff]
      %v215 = vld [vmem:[%s205] sm:$0xff]
      %v216 = vand.u32 2147483647, %v214
      %v217 = vsub.f32 0.0, %v216
      %v218 = vmul.f32 %v217, 1.442695
      %v219 = vpow.pop %v218
      %v220 = vmax.f32 %v214, 0.0
      %v221 = vmul.f32 %v214, %v215
      %v222 = vsub.f32 %v220, %v221
      %v223 = vadd.f32 %v219, 1.0
      %v224 = vlog2.pop %v223
      %v225 = vmul.f32 %v224, 0.6931472
      %v226 = vmul.f32 -0.5, %v219
      %v227 = vadd.f32 %v226, 1.0
      %v228 = vmul.f32 %v227, %v219
      %v229 = vand.u32 2147483647, %v219
      %vm230 = vcmp.lt.f32.partialorder %v229, 0.0004427343
      %v231 = vsel %vm230, %v228, %v225
      %v232 = vadd.f32 %v222, %v231
      %234 = vst [vmem:[#allocation1] ss:$2 sm:$0xff] %v232
      %v235 = vld.sshfl [vmem:[#allocation1] sm:$0xff pattern:$0x75316420]
      %v236 = vld.sshfl [vmem:[#allocation1 + $0x8] sm:$0xff pattern:$0x75316420]
      %vm239 = vcmask 1043456
      %v240 = vsel %vm239, %v235, 0.0
      %v241 = vsel %vm239, %v236, 0.0
      %v242 = vadd.f32 %v240, %v241
      %243 = vadd.xlane.f32.xlu0 %v242
      %v244 = vpop.xlane.xlu0 %243
      %v245 = vrot.slane %v244, 4
      %v246 = vadd.f32 %v244, %v245
      %v247 = vrot.slane %v246, 2
      %v248 = vadd.f32 %v246, %v247
      %v249 = vrot.slane %v248, 1
      %v250 = vadd.f32 %v248, %v249
      %s251 = vtos %v250
      %vm252 = vcmp.ge.f32.partialorder %v214, 0.0
      %v253 = vsel %vm252, 1.0, %v219
      %v254 = vadd.f32 %v219, 1.0
      %v255 = vrcp.pop %v254
      %v256 = vmul.f32 %v254, %v255
      %v257 = vsub.f32 1.0, %v256
      %v258 = vmul.f32 %v255, %v257
      %v259 = vadd.f32 %v255, %v258
      %vm260 = vweird.f32 %v254
      %vm261 = vweird.f32 %v255
      %vm262 = vmor %vm260, %vm261
      %v263 = vsel %vm262, %v255, %v259
      %v264 = vand.u32 2147483647, %v254
      %vm265 = vcmp.eq.f32.partialorder %v264, 8.507059e+37
      %v266 = vand.u32 %v254, 2147483648
      %v267 = vor.u32 1.1754944e-38, %v266
      %v268 = vsel %vm265, %v267, %v263
      %v269 = vmul.f32 %v253, %v268
      %v270 = vmul.f32 %v269, %v215
      %v272 = vperm.slane %v270, 1
      %v273 = vperm.slane %v270, 5
      %vm276 = vcmask 1040384
      %v277 = vsel %vm276, %v272, 0.0
      %v278 = vsel %vm276, %v273, 0.0
      %v279 = vadd.f32 %v277, %v278
      %280 = vadd.xlane.f32.xlu0 %v279
      %v281 = vpop.xlane.xlu0 %280
      %v282 = vrot.slane %v281, 4
      %v283 = vadd.f32 %v281, %v282
      %v284 = vrot.slane %v283, 2
      %v285 = vadd.f32 %v283, %v284
      %v286 = vrot.slane %v285, 1
      %v287 = vadd.f32 %v285, %v286
      %s288 = vtos %v287
      %v289 = vperm.slane %v270, 2
      %v290 = vperm.slane %v270, 6
      %v293 = vsel %vm276, %v289, 0.0
      %v294 = vsel %vm276, %v290, 0.0
      %v295 = vadd.f32 %v293, %v294
      %296 = vadd.xlane.f32.xlu0 %v295
      %v297 = vpop.xlane.xlu0 %296
      %v298 = vrot.slane %v297, 4
      %v299 = vadd.f32 %v297, %v298
      %v300 = vrot.slane %v299, 2
      %v301 = vadd.f32 %v299, %v300
      %v302 = vrot.slane %v301, 1
      %v303 = vadd.f32 %v301, %v302
      %s304 = vtos %v303
      %v306 = vperm.slane %v269, 1
      %v307 = vperm.slane %v269, 5
      %v310 = vsel %vm276, %v306, 0.0
      %v311 = vsel %vm276, %v307, 0.0
      %v312 = vadd.f32 %v310, %v311
      %313 = vadd.xlane.f32.xlu0 %v312
      %v314 = vpop.xlane.xlu0 %313
      %v315 = vrot.slane %v314, 4
      %v316 = vadd.f32 %v314, %v315
      %v317 = vrot.slane %v316, 2
      %v318 = vadd.f32 %v316, %v317
      %v319 = vrot.slane %v318, 1
      %v320 = vadd.f32 %v318, %v319
      %s321 = vtos %v320
      %v322 = vperm.slane %v269, 2
      %v323 = vperm.slane %v269, 6
      %v326 = vsel %vm276, %v322, 0.0
      %v327 = vsel %vm276, %v323, 0.0
      %v328 = vadd.f32 %v326, %v327
      %329 = vadd.xlane.f32.xlu0 %v328
      %v330 = vpop.xlane.xlu0 %329
      %v331 = vrot.slane %v330, 4
      %v332 = vadd.f32 %v330, %v331
      %v333 = vrot.slane %v332, 2
      %v334 = vadd.f32 %v332, %v333
      %v335 = vrot.slane %v334, 1
      %v336 = vadd.f32 %v334, %v335
      %s337 = vtos %v336
      %v339 = vperm.slane %v215, 1
      %v340 = vperm.slane %v215, 5
      %v343 = vsel %vm276, %v339, 0.0
      %v344 = vsel %vm276, %v340, 0.0
      %v345 = vadd.f32 %v343, %v344
      %346 = vadd.xlane.f32.xlu0 %v345
      %v347 = vpop.xlane.xlu0 %346
      %v348 = vrot.slane %v347, 4
      %v349 = vadd.f32 %v347, %v348
      %v350 = vrot.slane %v349, 2
      %v351 = vadd.f32 %v349, %v350
      %v352 = vrot.slane %v351, 1
      %v353 = vadd.f32 %v351, %v352
      %s354 = vtos %v353
      %v355 = vperm.slane %v215, 2
      %v356 = vperm.slane %v215, 6
      %v359 = vsel %vm276, %v355, 0.0
      %v360 = vsel %vm276, %v356, 0.0
      %v361 = vadd.f32 %v359, %v360
      %362 = vadd.xlane.f32.xlu0 %v361
      %v363 = vpop.xlane.xlu0 %362
      %v364 = vrot.slane %v363, 4
      %v365 = vadd.f32 %v363, %v364
      %v366 = vrot.slane %v365, 2
      %v367 = vadd.f32 %v365, %v366
      %v368 = vrot.slane %v367, 1
      %v369 = vadd.f32 %v367, %v368
      %s370 = vtos %v369
      %v371 = vlaneseq
      %v372 = vshrl.u32 %v371, 7
      %vm373 = vcmp.eq.s32.totalorder %v372, 0
      %v374 = vstv %s251
      %v375 = vsel %vm373, %v374, 0.0
      %vm376 = vcmp.eq.s32.totalorder %v372, 1
      %v377 = vstv %s288
      %v378 = vsel %vm376, %v377, %v375
      %vm379 = vcmp.eq.s32.totalorder %v372, 2
      %v380 = vstv %s321
      %v381 = vsel %vm379, %v380, %v378
      %vm382 = vcmp.eq.s32.totalorder %v372, 3
      %v383 = vstv %s354
      %v384 = vsel %vm382, %v383, %v381
      %vm385 = vcmp.eq.s32.totalorder %v372, 4
      %v386 = vstv %s304
      %v387 = vsel %vm385, %v386, %v384
      %vm388 = vcmp.eq.s32.totalorder %v372, 5
      %v389 = vstv %s337
      %v390 = vsel %vm388, %v389, %v387
      %vm391 = vcmp.eq.s32.totalorder %v372, 6
      %v392 = vstv %s370
      %v393 = vsel %vm391, %v392, %v390
      %394 = vst [vmem:[%s213] sm:$0xff] %v393
      %p395 = scmp.lt.s32.totalorder %s17, 1
      %s396 = scalar_select %p395, %s17, 1
      %p397 = scmp.lt.s32.totalorder %s18, 0
      %s398 = scalar_select %p397, %s18, 0
      %s399 = sadd.s32 %s398, %s396
      %s400 = smul.addr %s399, 8
      %s401 = scalar_lea.vmem %s2, %s400
      // Predicated region
      $region29: #{bce_dice_loss_lits2017.1} parent=27 // pred_check
        %p402 = pneg %p101
      $region30: #{bce_dice_loss_lits2017.1} parent=27 // pred_check_branch
        %404 = sbr.rel (%p402) target = $region32
      $region31: #{bce_dice_loss_lits2017.1} parent=27 // pred_region
        _
      $region32: #{bce_dice_loss_lits2017.1} parent=27 // pred_fallthru
        _
    $region28: #{bce_dice_loss_lits2017.1} parent=5 // pred_fallthru
      _
    %p405 = scmp.le.s32.totalorder 2, %s8
    // Predicated region
    $region33: #{bce_dice_loss_lits2017.1} parent=5 // pred_check
      %p406 = pneg %p405
    $region34: #{bce_dice_loss_lits2017.1} parent=5 // pred_check_branch
      %408 = sbr.rel (%p406) target = $region36
    $region35: #{bce_dice_loss_lits2017.1} parent=5 // pred_region
      %s409 = ssub.s32 %s8, 2
      // Predicated region
      $region37: #{bce_dice_loss_lits2017.1} parent=35 // pred_check
        %p410 = pneg %p107
      $region38: #{bce_dice_loss_lits2017.1} parent=35 // pred_check_branch
        %412 = sbr.rel (%p410) target = $region40
      $region39: #{bce_dice_loss_lits2017.1} parent=35 // pred_region
        %p413 = scmp.lt.s32.totalorder %s19, 1
        %s414 = scalar_select %p413, %s19, 1
        %p415 = scmp.lt.s32.totalorder %s20, 0
        %s416 = scalar_select %p415, %s20, 0
        %s417 = sadd.s32 %s416, %s414
        %s418 = smul.addr %s417, 8
        %s419 = scalar_lea.vmem %s2, %s418
      $region40: #{bce_dice_loss_lits2017.1} parent=35 // pred_fallthru
        _
    $region36: #{bce_dice_loss_lits2017.1} parent=5 // pred_fallthru
      _
  $region6: #{bce_dice_loss_lits2017.1} parent=0 // loop_footer
    %s12 = sadd.s32 1, %s8
  $region7: #{bce_dice_loss_lits2017.1} parent=0 // loop_footer_branch
    %7 = sbr.rel target = $region3
  $region8: #{bce_dice_loss_lits2017.1} parent=0 // loop_exit
    _

</llo_original>
